<compile_context>
chip_gen: v7x
topology: tpu7x:2x2x1
jax: 0.10.0
libtpu: 0.0.40
codegen_flags: <defaults>
</compile_context>

<pallas_src>
import functools

import jax
import jax.numpy as jnp
from jax.experimental import pallas as pl
from jax.experimental.pallas import tpu as pltpu


def _regression_head_kernel(x_ref, w_ref, b_ref, o_ref, *, n_blk):
    # x_ref: (n_blk, C_in, tile_hw)   w_ref: (C_in, C_out)   b_ref: (1, C_out)
    # o_ref: (n_blk, tile_hw, C_out)
    w = w_ref[...]
    b = b_ref[...]
    for i in range(n_blk):                     # small static unroll (<= 8)
        # out[t, o] = sum_c x[c, t] * w[c, o]  -> result already in (HW, C_out)
        # order, so the host-side reshape to (N, HW*A, 7) is a free view.
        acc = jax.lax.dot_general(
            x_ref[i], w,
            dimension_numbers=(((0,), (0,)), ((), ())),
            preferred_element_type=jnp.float32)
        o_ref[i] = (acc + b).astype(o_ref.dtype)


def _default_tile_target():
    """Generation-aware HW tile target for the fused-transpose output layout."""
    try:
        kind = jax.devices()[0].device_kind.lower()
    except Exception:
        kind = ""
    if "v7" in kind or "tpu7" in kind:
        return 8192     # v7x: faster HBM -> per-step overhead hurts more
    return 4096         # v5e / v6e


@functools.partial(jax.jit, static_argnames=("anchors_per_position", "tile_target"))
def _regression_head_impl(x_nchw, weight, bias, *, anchors_per_position,
                          tile_target):
    n, c_in, h, w = x_nchw.shape
    c_out = weight.shape[0]
    assert c_out == 7 * anchors_per_position
    hw = h * w

    # --- tile / batch-block selection --------------------------------------
    # Fused-transpose output => VMEM out buffer is lane-padded (tile_hw, 128),
    # so cap the tile (vs. 16k+ for a lane-dense-output variant).  Must be a
    # multiple of 128 unless it equals the full HW extent.
    tile_target = max(128, (min(int(tile_target), 8192) // 128) * 128)
    if hw > tile_target:
        tile_hw = tile_target          # multiple of 128
        n_blk = 1
    else:
        tile_hw = hw                   # full extent: any size is legal
        hw_lanes = -(-hw // 128) * 128
        n_blk = max(1, min(n, 8, tile_target // hw_lanes))

    grid = (pl.cdiv(n, n_blk), pl.cdiv(hw, tile_hw))

    # Free reshape of contiguous NCHW: no HBM transpose of the big activation.
    x_flat = x_nchw.reshape(n, c_in, hw)
    # bf16 passthrough: if x is bf16 the MXU runs bf16 with f32 accumulation.
    w_t = weight.astype(x_nchw.dtype).T                    # (C_in, C_out)
    b_row = bias.reshape(1, c_out).astype(jnp.float32)

    kernel = functools.partial(_regression_head_kernel, n_blk=n_blk)

    itemsize = x_flat.dtype.itemsize
    cost = pl.CostEstimate(
        flops=2 * n * hw * c_in * c_out,
        transcendentals=0,
        bytes_accessed=(n * hw * c_in * itemsize          # activation read
                        + n * hw * c_out * 4              # output write
                        + c_in * c_out * itemsize + c_out * 4))

    out = pl.pallas_call(
        kernel,
        out_shape=jax.ShapeDtypeStruct((n, hw, c_out), jnp.float32),
        grid_spec=pltpu.PrefetchScalarGridSpec(
            num_scalar_prefetch=0,
            grid=grid,
            in_specs=[
                # streamed activation block
                pl.BlockSpec((n_blk, c_in, tile_hw), lambda bi, j: (bi, 0, j)),
                # weight / bias: constant index_map -> resident in VMEM
                pl.BlockSpec((c_in, c_out), lambda bi, j: (0, 0)),
                pl.BlockSpec((1, c_out), lambda bi, j: (0, 0)),
            ],
            out_specs=pl.BlockSpec((n_blk, tile_hw, c_out),
                                   lambda bi, j: (bi, j, 0)),
        ),
        compiler_params=pltpu.CompilerParams(
            dimension_semantics=("parallel", "parallel"),
            # Explicit limit: covers the lane-padded out buffers and lifts
            # v5e's 16 MiB scoped default (max usage here is ~10 MiB).
            vmem_limit_bytes=32 * 1024 * 1024),
        cost_estimate=cost,
    )(x_flat, w_t, b_row)

    # Contiguous view only (channel index c = a*7 + k already sits innermost):
    # (N, HW, A*7) -> (N, HW*A, 7)  ==  .permute(0,2,3,1).contiguous().view(...)
    return out.reshape(n, hw * anchors_per_position, 7)


def regression_head_forward(x_nchw, weight, bias, *, anchors_per_position,
                            tile_hw=None):
    """Forward pass of RegressionHead.

    x_nchw : (N, C_in, H, W)
    weight : (C_out, C_in)   1x1 conv weight, squeezed
    bias   : (C_out,)
    returns: (N, H*W*anchors_per_position, 7) float32
    """
    tile_target = _default_tile_target() if tile_hw is None else int(tile_hw)
    return _regression_head_impl(x_nchw, weight, bias,
                                 anchors_per_position=anchors_per_position,
                                 tile_target=tile_target)


def reference_forward(x_nchw, weight, bias, anchors_per_position):
    """Pure-JAX reference replicating the PyTorch module semantics."""
    conv = jnp.einsum("nchw,oc->nohw", x_nchw, weight) + bias[None, :, None, None]
    regs = jnp.transpose(conv, (0, 2, 3, 1))                # NCHW -> NHWC
    n, h, w, c_out = regs.shape
    return regs.reshape(n, h * w * anchors_per_position, 7)


if __name__ == "__main__":
    key = jax.random.PRNGKey(0)

    def run_case(n, c_in, h, w, anchors, tile_hw=None, seed_offset=0):
        c_out = 7 * anchors
        kx, kw, kb = jax.random.split(jax.random.fold_in(key, seed_offset), 3)
        x = jax.random.normal(kx, (n, c_in, h, w), dtype=jnp.float32)
        weight = jax.random.normal(kw, (c_out, c_in), dtype=jnp.float32) * 0.05
        bias = jax.random.normal(kb, (c_out,), dtype=jnp.float32) * 0.05

        out = regression_head_forward(x, weight, bias,
                                      anchors_per_position=anchors,
                                      tile_hw=tile_hw)
        out = jax.block_until_ready(out)

        ref = reference_forward(x, weight, bias, anchors)
        assert out.shape == (n, h * w * anchors, 7), out.shape
        assert jnp.allclose(out, ref, atol=1e-4, rtol=1e-4), "mismatch vs reference"

    # Small config (HW=256 <= tile): exercises the batch-packing path (n_blk=2).
    run_case(2, 32, 16, 16, 2)
    # Forced small tile (HW=288, tile=128): exercises the tiled path with a
    # ragged last HW block (masked output write).
    run_case(2, 32, 16, 18, 2, tile_hw=128, seed_offset=1)

    print("KERNEL_OK")
</pallas_src>

<mosaic_0001>
module attributes {stable_mosaic.version = 11 : i64} {
  func.func @_regression_head_kernel(%arg0: i32, %arg1: i32, %arg2: memref<2x32x256xf32, #tpu.memory_space<vmem>>, %arg3: memref<32x14xf32, #tpu.memory_space<vmem>>, %arg4: memref<1x14xf32, #tpu.memory_space<vmem>>, %arg5: memref<2x256x14xf32, #tpu.memory_space<vmem>>) attributes {dimension_semantics = [#tpu.dimension_semantics<parallel>, #tpu.dimension_semantics<parallel>], iteration_bounds = array<i64: 1, 1>, scalar_prefetch = 0 : i64, scratch_operands = 0 : i64, tpu.core_type = #tpu.core_type<tc>, window_params = [{transform_indices = @transform_0, window_bounds = array<i64: 2, 32, 256>}, {pipeline_mode = #tpu.pipeline_mode<synchronous>, transform_indices = @transform_1, window_bounds = array<i64: 32, 14>}, {pipeline_mode = #tpu.pipeline_mode<synchronous>, transform_indices = @transform_2, window_bounds = array<i64: 1, 14>}, {transform_indices = @transform_3, window_bounds = array<i64: 2, 256, 14>}]} {
    %c0 = arith.constant 0 : index
    %c0_0 = arith.constant 0 : index
    %0 = vector.load %arg3[%c0, %c0_0] : memref<32x14xf32, #tpu.memory_space<vmem>>, vector<32x14xf32>
    %c0_1 = arith.constant 0 : index
    %c0_2 = arith.constant 0 : index
    %1 = vector.load %arg4[%c0_1, %c0_2] : memref<1x14xf32, #tpu.memory_space<vmem>>, vector<1x14xf32>
    %c0_3 = arith.constant 0 : index
    %c0_4 = arith.constant 0 : index
    %c0_5 = arith.constant 0 : index
    %2 = vector.load %arg2[%c0_3, %c0_4, %c0_5] : memref<2x32x256xf32, #tpu.memory_space<vmem>>, vector<1x32x256xf32>
    %3 = vector.shape_cast %2 : vector<1x32x256xf32> to vector<32x256xf32>
    %cst = arith.constant dense<0.000000e+00> : vector<256x14xf32>
    %4 = tpu.matmul %3, %0, %cst {dimension_numbers = #tpu.dot_dimension_numbers<[0], [0], [1], [1], [0, 1, 1, 1], [], []>} : vector<32x256xf32>, vector<32x14xf32>, vector<256x14xf32> -> vector<256x14xf32>
    %5 = vector.broadcast %1 : vector<1x14xf32> to vector<256x14xf32>
    %6 = arith.addf %4, %5 : vector<256x14xf32>
    %c0_6 = arith.constant 0 : index
    %c0_7 = arith.constant 0 : index
    %c0_8 = arith.constant 0 : index
    %7 = vector.load %arg5[%c0_6, %c0_7, %c0_8] : memref<2x256x14xf32, #tpu.memory_space<vmem>>, vector<1x256x14xf32>
    %8 = vector.shape_cast %7 : vector<1x256x14xf32> to vector<256x14xf32>
    %9 = vector.shape_cast %6 : vector<256x14xf32> to vector<1x256x14xf32>
    tpu.vector_store %arg5[%c0_6, %c0_7, %c0_8], %9 {strides = array<i32>} : memref<2x256x14xf32, #tpu.memory_space<vmem>>, vector<1x256x14xf32>,
    %c1 = arith.constant 1 : index
    %c0_9 = arith.constant 0 : index
    %c0_10 = arith.constant 0 : index
    %10 = vector.load %arg2[%c1, %c0_9, %c0_10] : memref<2x32x256xf32, #tpu.memory_space<vmem>>, vector<1x32x256xf32>
    %11 = vector.shape_cast %10 : vector<1x32x256xf32> to vector<32x256xf32>
    %cst_11 = arith.constant dense<0.000000e+00> : vector<256x14xf32>
    %12 = tpu.matmul %11, %0, %cst_11 {dimension_numbers = #tpu.dot_dimension_numbers<[0], [0], [1], [1], [0, 1, 1, 1], [], []>} : vector<32x256xf32>, vector<32x14xf32>, vector<256x14xf32> -> vector<256x14xf32>
    %13 = vector.broadcast %1 : vector<1x14xf32> to vector<256x14xf32>
    %14 = arith.addf %12, %13 : vector<256x14xf32>
    %c1_12 = arith.constant 1 : index
    %c0_13 = arith.constant 0 : index
    %c0_14 = arith.constant 0 : index
    %15 = vector.load %arg5[%c1_12, %c0_13, %c0_14] : memref<2x256x14xf32, #tpu.memory_space<vmem>>, vector<1x256x14xf32>
    %16 = vector.shape_cast %15 : vector<1x256x14xf32> to vector<256x14xf32>
    %17 = vector.shape_cast %14 : vector<256x14xf32> to vector<1x256x14xf32>
    tpu.vector_store %arg5[%c1_12, %c0_13, %c0_14], %17 {strides = array<i32>} : memref<2x256x14xf32, #tpu.memory_space<vmem>>, vector<1x256x14xf32>,
    return
  }
  func.func @transform_0(%arg0: i32, %arg1: i32) -> (i32, i32, i32) {
    %c0_i32 = arith.constant 0 : i32
    %c0_i32_0 = arith.constant 0 : i32
    return %arg0, %c0_i32, %arg1 : i32, i32, i32
  }
  func.func @transform_1(%arg0: i32, %arg1: i32) -> (i32, i32) {
    %c0_i32 = arith.constant 0 : i32
    %c0_i32_0 = arith.constant 0 : i32
    %c0_i32_1 = arith.constant 0 : i32
    return %c0_i32, %c0_i32_0 : i32, i32
  }
  func.func @transform_2(%arg0: i32, %arg1: i32) -> (i32, i32) {
    %c0_i32 = arith.constant 0 : i32
    %c0_i32_0 = arith.constant 0 : i32
    %c0_i32_1 = arith.constant 0 : i32
    return %c0_i32, %c0_i32_0 : i32, i32
  }
  func.func @transform_3(%arg0: i32, %arg1: i32) -> (i32, i32, i32) {
    %c0_i32 = arith.constant 0 : i32
    %c0_i32_0 = arith.constant 0 : i32
    return %arg0, %arg1, %c0_i32 : i32, i32, i32
  }
}

</mosaic_0001>

<llo_original>
// kernel: _regression_head_impl.1
$region0: #{_regression_head_impl.1}
  #allocation0 [shape = 'u32[]', space=smem, size = 0x4, offset = 0x4, fixed_abs, tag = 'smem constant byte address 0x4 - core index']
  #allocation1 [shape = 'u32[144,128]{1,0:T(1,128)}', space=vmem, size = 0x12000, scoped, tag = 'internal scratch']
  %s0 = inlined_call_operand.vmem [shape: f32[2,32,256], index: 0, kind: input, shape index: {}]
  %s1 = inlined_call_operand.vmem [shape: f32[32,14], index: 1, kind: input, shape index: {}]
  %s2 = inlined_call_operand.vmem [shape: f32[1,14], index: 2, kind: input, shape index: {}]
  %s3 = inlined_call_operand.vmem [shape: f32[2,256,14], index: 3, kind: output, shape index: {}]
  %s4 = sld [smem:[#allocation0]]
  $region22: #{_regression_head_impl.1} parent=0
    _
  %s6 = ssub.s32 1, %s4
  %s7 = scalar_select 0, %s6, %s4
  // Predicated region
  $region2: #{_regression_head_impl.1} parent=0 // pred_check
    _
  $region3: #{_regression_head_impl.1} parent=0 // pred_check_branch
    %9 = sbr.rel (0) target = $region5
  $region4: #{_regression_head_impl.1} parent=0 // pred_region
    _
  $region5: #{_regression_head_impl.1} parent=0 // pred_fallthru
    _
  // Predicated region
  $region6: #{_regression_head_impl.1} parent=0 // pred_check
    _
  $region7: #{_regression_head_impl.1} parent=0 // pred_check_branch
    %11 = sbr.rel (0) target = $region9
  $region8: #{_regression_head_impl.1} parent=0 // pred_region
    _
  $region9: #{_regression_head_impl.1} parent=0 // pred_fallthru
    _
  // Predicated region
  $region10: #{_regression_head_impl.1} parent=0 // pred_check
    _
  $region11: #{_regression_head_impl.1} parent=0 // pred_check_branch
    %13 = sbr.rel (0) target = $region13
  $region12: #{_regression_head_impl.1} parent=0 // pred_region
    _
  $region13: #{_regression_head_impl.1} parent=0 // pred_fallthru
    _
  %v14 = vld [vmem:[%s1] sm:$0xff]
  %v15 = vld [vmem:[%s1 + $0x8] sm:$0xff]
  %v16 = vld [vmem:[%s1 + $0x10] sm:$0xff]
  %v17 = vld [vmem:[%s1 + $0x18] sm:$0xff]
  %v18 = vld [vmem:[%s2] sm:$0x1]
  %v19 = vld [vmem:[%s0] sm:$0xff]
  %v20 = vld [vmem:[%s0 + $0x8] sm:$0xff]
  %v21 = vld [vmem:[%s0 + $0x10] sm:$0xff]
  %v22 = vld [vmem:[%s0 + $0x18] sm:$0xff]
  %v23 = vld [vmem:[%s0 + $0x20] sm:$0xff]
  %v24 = vld [vmem:[%s0 + $0x28] sm:$0xff]
  %v25 = vld [vmem:[%s0 + $0x30] sm:$0xff]
  %v26 = vld [vmem:[%s0 + $0x38] sm:$0xff]
  %v28 = vlaneseq
  %v29 = vshrl.u32 %v28, 7
  %v30 = vsub.s32 0, %v29
  %v31 = vrot.slane %v18, %v30
  %33 = vxpose.xlu0.b32.start [1/16] %v19, 128
  %34 = vxpose.xlu0.b32.cont [2/16] %v21, 128
  %35 = vxpose.xlu0.b32.cont [3/16] %v23, 128
  %36 = vxpose.xlu0.b32.cont [4/16] %v25, 128
  %37 = vxpose.xlu0.b32.cont [5/16] 0.0, 128
  %38 = vxpose.xlu0.b32.cont [6/16] 0.0, 128
  %39 = vxpose.xlu0.b32.cont [7/16] 0.0, 128
  %40 = vxpose.xlu0.b32.cont [8/16] 0.0, 128
  %41 = vxpose.xlu0.b32.cont [9/16] 0.0, 128
  %42 = vxpose.xlu0.b32.cont [10/16] 0.0, 128
  %43 = vxpose.xlu0.b32.cont [11/16] 0.0, 128
  %44 = vxpose.xlu0.b32.cont [12/16] 0.0, 128
  %45 = vxpose.xlu0.b32.cont [13/16] 0.0, 128
  %46 = vxpose.xlu0.b32.cont [14/16] 0.0, 128
  %47 = vxpose.xlu0.b32.cont [15/16] 0.0, 128
  %48 = vxpose.xlu0.b32.end [16/16] 0.0, 128
  %v49 = vpop.trf.xlu0
  %v50 = vpop.trf.xlu0
  %v51 = vpop.trf.xlu0
  %v52 = vpop.trf.xlu0
  %v53 = vpop.trf.xlu0
  %v54 = vpop.trf.xlu0
  %v55 = vpop.trf.xlu0
  %v56 = vpop.trf.xlu0
  %v57 = vpop.trf.xlu0
  %v58 = vpop.trf.xlu0
  %v59 = vpop.trf.xlu0
  %v60 = vpop.trf.xlu0
  %v61 = vpop.trf.xlu0
  %v62 = vpop.trf.xlu0
  %v63 = vpop.trf.xlu0
  %v64 = vpop.trf.xlu0
  %65 = vxpose.xlu0.b32.start [1/16] %v20, 128
  %66 = vxpose.xlu0.b32.cont [2/16] %v22, 128
  %67 = vxpose.xlu0.b32.cont [3/16] %v24, 128
  %68 = vxpose.xlu0.b32.cont [4/16] %v26, 128
  %69 = vxpose.xlu0.b32.cont [5/16] 0.0, 128
  %70 = vxpose.xlu0.b32.cont [6/16] 0.0, 128
  %71 = vxpose.xlu0.b32.cont [7/16] 0.0, 128
  %72 = vxpose.xlu0.b32.cont [8/16] 0.0, 128
  %73 = vxpose.xlu0.b32.cont [9/16] 0.0, 128
  %74 = vxpose.xlu0.b32.cont [10/16] 0.0, 128
  %75 = vxpose.xlu0.b32.cont [11/16] 0.0, 128
  %76 = vxpose.xlu0.b32.cont [12/16] 0.0, 128
  %77 = vxpose.xlu0.b32.cont [13/16] 0.0, 128
  %78 = vxpose.xlu0.b32.cont [14/16] 0.0, 128
  %79 = vxpose.xlu0.b32.cont [15/16] 0.0, 128
  %80 = vxpose.xlu0.b32.end [16/16] 0.0, 128
  %v81 = vpop.trf.xlu0
  %v82 = vpop.trf.xlu0
  %v83 = vpop.trf.xlu0
  %v84 = vpop.trf.xlu0
  %v85 = vpop.trf.xlu0
  %v86 = vpop.trf.xlu0
  %v87 = vpop.trf.xlu0
  %v88 = vpop.trf.xlu0
  %v89 = vpop.trf.xlu0
  %v90 = vpop.trf.xlu0
  %v91 = vpop.trf.xlu0
  %v92 = vpop.trf.xlu0
  %v93 = vpop.trf.xlu0
  %v94 = vpop.trf.xlu0
  %v95 = vpop.trf.xlu0
  %v96 = vpop.trf.xlu0
  %vm97 = vcmask 261120
  %v99 = vsel %vm97, %v49, 0
  %v102 = vsel %vm97, %v50, 0
  %v105 = vsel %vm97, %v51, 0
  %v108 = vsel %vm97, %v52, 0
  %v111 = vsel %vm97, %v53, 0
  %v114 = vsel %vm97, %v54, 0
  %v117 = vsel %vm97, %v55, 0
  %v120 = vsel %vm97, %v56, 0
  %v123 = vsel %vm97, %v57, 0
  %v126 = vsel %vm97, %v58, 0
  %v129 = vsel %vm97, %v59, 0
  %v132 = vsel %vm97, %v60, 0
  %v135 = vsel %vm97, %v61, 0
  %v138 = vsel %vm97, %v62, 0
  %v141 = vsel %vm97, %v63, 0
  %v144 = vsel %vm97, %v64, 0
  %v147 = vsel %vm97, %v81, 0
  %v150 = vsel %vm97, %v82, 0
  %v153 = vsel %vm97, %v83, 0
  %v156 = vsel %vm97, %v84, 0
  %v159 = vsel %vm97, %v85, 0
  %v162 = vsel %vm97, %v86, 0
  %v165 = vsel %vm97, %v87, 0
  %v168 = vsel %vm97, %v88, 0
  %v171 = vsel %vm97, %v89, 0
  %v174 = vsel %vm97, %v90, 0
  %v177 = vsel %vm97, %v91, 0
  %v180 = vsel %vm97, %v92, 0
  %v183 = vsel %vm97, %v93, 0
  %v186 = vsel %vm97, %v94, 0
  %v189 = vsel %vm97, %v95, 0
  %v192 = vsel %vm97, %v96, 0
  %194 = vmatprep.subr.mxu0 0.0
  %195 = vmatpush1.msra.mxu0 %v14
  %196 = vmatprep.subr.mxu0 0.0
  %197 = vmatpush1.msra.mxu0 %v15
  %198 = vmatprep.subr.mxu0 0.0
  %199 = vmatpush1.msra.mxu0 %v16
  %200 = vmatprep.subr.mxu0 0.0
  %201 = vmatpush1.msra.mxu0 %v17
  %202 = vmatprep.subr.mxu0 0.0
  %203 = vmatpush1.msra.mxu0 0.0
  %204 = vmatprep.subr.mxu0 0.0
  %205 = vmatpush1.msra.mxu0 0.0
  %206 = vmatprep.subr.mxu0 0.0
  %207 = vmatpush1.msra.mxu0 0.0
  %208 = vmatprep.subr.mxu0 0.0
  %209 = vmatpush1.msra.mxu0 0.0
  %210 = vmatprep.subr.mxu0 0.0
  %211 = vmatpush1.msra.mxu0 0.0
  %212 = vmatprep.subr.mxu0 0.0
  %213 = vmatpush1.msra.mxu0 0.0
  %214 = vmatprep.subr.mxu0 0.0
  %215 = vmatpush1.msra.mxu0 0.0
  %216 = vmatprep.subr.mxu0 0.0
  %217 = vmatpush1.msra.mxu0 0.0
  %218 = vmatprep.subr.mxu0 0.0
  %219 = vmatpush1.msra.mxu0 0.0
  %220 = vmatprep.subr.mxu0 0.0
  %221 = vmatpush1.msra.mxu0 0.0
  %222 = vmatprep.subr.mxu0 0.0
  %223 = vmatpush1.msra.mxu0 0.0
  %224 = vmatprep.subr.mxu0 0.0
  %225 = vmatpush1.msra.mxu0 0.0
  %226 = vmatprep.subr.mxu0 0.0
  %227 = vmatpush1.msra.mxu0 0.0
  %228 = vmatprep.subr.mxu0 0.0
  %229 = vmatpush1.msra.mxu0 0.0
  %230 = vmatprep.subr.mxu0 0.0
  %231 = vmatpush1.msra.mxu0 0.0
  %232 = vmatprep.subr.mxu0 0.0
  %233 = vmatpush1.msra.mxu0 0.0
  %234 = vmatprep.subr.mxu0 0.0
  %235 = vmatpush1.msra.mxu0 0.0
  %236 = vmatprep.subr.mxu0 0.0
  %237 = vmatpush1.msra.mxu0 0.0
  %238 = vmatprep.subr.mxu0 0.0
  %239 = vmatpush1.msra.mxu0 0.0
  %240 = vmatprep.subr.mxu0 0.0
  %241 = vmatpush1.msra.mxu0 0.0
  %242 = vmatprep.subr.mxu0 0.0
  %243 = vmatpush1.msra.mxu0 0.0
  %244 = vmatprep.subr.mxu0 0.0
  %245 = vmatpush1.msra.mxu0 0.0
  %246 = vmatprep.subr.mxu0 0.0
  %247 = vmatpush1.msra.mxu0 0.0
  %248 = vmatprep.subr.mxu0 0.0
  %249 = vmatpush1.msra.mxu0 0.0
  %250 = vmatprep.subr.mxu0 0.0
  %251 = vmatpush1.msra.mxu0 0.0
  %252 = vmatprep.subr.mxu0 0.0
  %253 = vmatpush1.msra.mxu0 0.0
  %254 = vmatprep.subr.mxu0 0.0
  %255 = vmatpush1.msra.mxu0 0.0
  %256 = vmatprep.subr.mxu0 0.0
  %257 = vmatpush1.msra.mxu0 0.0
  %258 = vmatprep.mubr.f32.mxu0 0.0
  %259 = vmatmul.mubr.f32.gmra.mrb[0].mxu0 %v99
  %v260 = vpop.f32.mrb[0].mxu0
  %v261 = vadd.f32 %v31, %v260
  %v262 = vpop.f32.mrb[0].mxu0
  %263 = vmatprep.mubr.f32.mxu0 0.0
  %264 = vmatmul.mubr.f32.gmra.mrb[0].mxu0 %v102
  %v265 = vpop.f32.mrb[0].mxu0
  %v266 = vadd.f32 %v31, %v265
  %v267 = vpop.f32.mrb[0].mxu0
  %268 = vmatprep.mubr.f32.mxu0 0.0
  %269 = vmatmul.mubr.f32.gmra.mrb[0].mxu0 %v105
  %v270 = vpop.f32.mrb[0].mxu0
  %v271 = vadd.f32 %v31, %v270
  %v272 = vpop.f32.mrb[0].mxu0
  %273 = vmatprep.mubr.f32.mxu0 0.0
  %274 = vmatmul.mubr.f32.gmra.mrb[0].mxu0 %v108
  %v275 = vpop.f32.mrb[0].mxu0
  %v276 = vadd.f32 %v31, %v275
  %v277 = vpop.f32.mrb[0].mxu0
  %278 = vmatprep.mubr.f32.mxu0 0.0
  %279 = vmatmul.mubr.f32.gmra.mrb[0].mxu0 %v111
  %v280 = vpop.f32.mrb[0].mxu0
  %v281 = vadd.f32 %v31, %v280
  %v282 = vpop.f32.mrb[0].mxu0
  %283 = vmatprep.mubr.f32.mxu0 0.0
  %284 = vmatmul.mubr.f32.gmra.mrb[0].mxu0 %v114
  %v285 = vpop.f32.mrb[0].mxu0
  %v286 = vadd.f32 %v31, %v285
  %v287 = vpop.f32.mrb[0].mxu0
  %288 = vmatprep.mubr.f32.mxu0 0.0
  %289 = vmatmul.mubr.f32.gmra.mrb[0].mxu0 %v117
  %v290 = vpop.f32.mrb[0].mxu0
  %v291 = vadd.f32 %v31, %v290
  %v292 = vpop.f32.mrb[0].mxu0
  %293 = vmatprep.mubr.f32.mxu0 0.0
  %294 = vmatmul.mubr.f32.gmra.mrb[0].mxu0 %v120
  %v295 = vpop.f32.mrb[0].mxu0
  %v296 = vadd.f32 %v31, %v295
  %v297 = vpop.f32.mrb[0].mxu0
  %298 = vmatprep.mubr.f32.mxu0 0.0
  %299 = vmatmul.mubr.f32.gmra.mrb[0].mxu0 %v123
  %v300 = vpop.f32.mrb[0].mxu0
  %v301 = vadd.f32 %v31, %v300
  %v302 = vpop.f32.mrb[0].mxu0
  %303 = vmatprep.mubr.f32.mxu0 0.0
  %304 = vmatmul.mubr.f32.gmra.mrb[0].mxu0 %v126
  %v305 = vpop.f32.mrb[0].mxu0
  %v306 = vadd.f32 %v31, %v305
  %v307 = vpop.f32.mrb[0].mxu0
  %308 = vmatprep.mubr.f32.mxu0 0.0
  %309 = vmatmul.mubr.f32.gmra.mrb[0].mxu0 %v129
  %v310 = vpop.f32.mrb[0].mxu0
  %v311 = vadd.f32 %v31, %v310
  %v312 = vpop.f32.mrb[0].mxu0
  %313 = vmatprep.mubr.f32.mxu0 0.0
  %314 = vmatmul.mubr.f32.gmra.mrb[0].mxu0 %v132
  %v315 = vpop.f32.mrb[0].mxu0
  %v316 = vadd.f32 %v31, %v315
  %v317 = vpop.f32.mrb[0].mxu0
  %318 = vmatprep.mubr.f32.mxu0 0.0
  %319 = vmatmul.mubr.f32.gmra.mrb[0].mxu0 %v135
  %v320 = vpop.f32.mrb[0].mxu0
  %v321 = vadd.f32 %v31, %v320
  %v322 = vpop.f32.mrb[0].mxu0
  %323 = vmatprep.mubr.f32.mxu0 0.0
  %324 = vmatmul.mubr.f32.gmra.mrb[0].mxu0 %v138
  %v325 = vpop.f32.mrb[0].mxu0
  %v326 = vadd.f32 %v31, %v325
  %v327 = vpop.f32.mrb[0].mxu0
  %328 = vmatprep.mubr.f32.mxu0 0.0
  %329 = vmatmul.mubr.f32.gmra.mrb[0].mxu0 %v141
  %v330 = vpop.f32.mrb[0].mxu0
  %v331 = vadd.f32 %v31, %v330
  %v332 = vpop.f32.mrb[0].mxu0
  %333 = vmatprep.mubr.f32.mxu0 0.0
  %334 = vmatmul.mubr.f32.gmra.mrb[0].mxu0 %v144
  %v335 = vpop.f32.mrb[0].mxu0
  %v336 = vadd.f32 %v31, %v335
  %v337 = vpop.f32.mrb[0].mxu0
  %338 = vmatprep.mubr.f32.mxu0 0.0
  %339 = vmatmul.mubr.f32.gmra.mrb[0].mxu0 %v147
  %v340 = vpop.f32.mrb[0].mxu0
  %v341 = vadd.f32 %v31, %v340
  %v342 = vpop.f32.mrb[0].mxu0
  %343 = vmatprep.mubr.f32.mxu0 0.0
  %344 = vmatmul.mubr.f32.gmra.mrb[0].mxu0 %v150
  %v345 = vpop.f32.mrb[0].mxu0
  %v346 = vadd.f32 %v31, %v345
  %v347 = vpop.f32.mrb[0].mxu0
  %348 = vmatprep.mubr.f32.mxu0 0.0
  %349 = vmatmul.mubr.f32.gmra.mrb[0].mxu0 %v153
  %v350 = vpop.f32.mrb[0].mxu0
  %v351 = vadd.f32 %v31, %v350
  %v352 = vpop.f32.mrb[0].mxu0
  %353 = vmatprep.mubr.f32.mxu0 0.0
  %354 = vmatmul.mubr.f32.gmra.mrb[0].mxu0 %v156
  %v355 = vpop.f32.mrb[0].mxu0
  %v356 = vadd.f32 %v31, %v355
  %v357 = vpop.f32.mrb[0].mxu0
  %358 = vmatprep.mubr.f32.mxu0 0.0
  %359 = vmatmul.mubr.f32.gmra.mrb[0].mxu0 %v159
  %v360 = vpop.f32.mrb[0].mxu0
  %v361 = vadd.f32 %v31, %v360
  %v362 = vpop.f32.mrb[0].mxu0
  %363 = vmatprep.mubr.f32.mxu0 0.0
  %364 = vmatmul.mubr.f32.gmra.mrb[0].mxu0 %v162
  %v365 = vpop.f32.mrb[0].mxu0
  %v366 = vadd.f32 %v31, %v365
  %v367 = vpop.f32.mrb[0].mxu0
  %368 = vmatprep.mubr.f32.mxu0 0.0
  %369 = vmatmul.mubr.f32.gmra.mrb[0].mxu0 %v165
  %v370 = vpop.f32.mrb[0].mxu0
  %v371 = vadd.f32 %v31, %v370
  %v372 = vpop.f32.mrb[0].mxu0
  %373 = vmatprep.mubr.f32.mxu0 0.0
  %374 = vmatmul.mubr.f32.gmra.mrb[0].mxu0 %v168
  %v375 = vpop.f32.mrb[0].mxu0
  %v376 = vadd.f32 %v31, %v375
  %v377 = vpop.f32.mrb[0].mxu0
  %378 = vmatprep.mubr.f32.mxu0 0.0
  %379 = vmatmul.mubr.f32.gmra.mrb[0].mxu0 %v171
  %v380 = vpop.f32.mrb[0].mxu0
  %v381 = vadd.f32 %v31, %v380
  %v382 = vpop.f32.mrb[0].mxu0
  %383 = vmatprep.mubr.f32.mxu0 0.0
  %384 = vmatmul.mubr.f32.gmra.mrb[0].mxu0 %v174
  %v385 = vpop.f32.mrb[0].mxu0
  %v386 = vadd.f32 %v31, %v385
  %v387 = vpop.f32.mrb[0].mxu0
  %388 = vmatprep.mubr.f32.mxu0 0.0
  %389 = vmatmul.mubr.f32.gmra.mrb[0].mxu0 %v177
  %v390 = vpop.f32.mrb[0].mxu0
  %v391 = vadd.f32 %v31, %v390
  %v392 = vpop.f32.mrb[0].mxu0
  %393 = vmatprep.mubr.f32.mxu0 0.0
  %394 = vmatmul.mubr.f32.gmra.mrb[0].mxu0 %v180
  %v395 = vpop.f32.mrb[0].mxu0
  %v396 = vadd.f32 %v31, %v395
  %v397 = vpop.f32.mrb[0].mxu0
  %398 = vmatprep.mubr.f32.mxu0 0.0
  %399 = vmatmul.mubr.f32.gmra.mrb[0].mxu0 %v183
  %v400 = vpop.f32.mrb[0].mxu0
  %v401 = vadd.f32 %v31, %v400
  %v402 = vpop.f32.mrb[0].mxu0
  %403 = vmatprep.mubr.f32.mxu0 0.0
  %404 = vmatmul.mubr.f32.gmra.mrb[0].mxu0 %v186
  %v405 = vpop.f32.mrb[0].mxu0
  %v406 = vadd.f32 %v31, %v405
  %v407 = vpop.f32.mrb[0].mxu0
  %408 = vmatprep.mubr.f32.mxu0 0.0
  %409 = vmatmul.mubr.f32.gmra.mrb[0].mxu0 %v189
  %v410 = vpop.f32.mrb[0].mxu0
  %v411 = vadd.f32 %v31, %v410
  %v412 = vpop.f32.mrb[0].mxu0
  %413 = vmatprep.mubr.f32.mxu0 0.0
  %414 = vmatmul.mubr.f32.gmra.mrb[0].mxu0 %v192
  %v415 = vpop.f32.mrb[0].mxu0
  %v416 = vadd.f32 %v31, %v415
  %v417 = vpop.f32.mrb[0].mxu0
  %418 = vdwg.mxu0
  %vm419 = vcmask 113664
  %420 = vst.msk [vmem:[%s3] sm:$0xff] %vm419, %v261
  %421 = vst.msk [vmem:[%s3 + $0x8] sm:$0xff] %vm419, %v266
  %422 = vst.msk [vmem:[%s3 + $0x10] sm:$0xff] %vm419, %v271
  %423 = vst.msk [vmem:[%s3 + $0x18] sm:$0xff] %vm419, %v276
  %424 = vst.msk [vmem:[%s3 + $0x20] sm:$0xff] %vm419, %v281
  %425 = vst.msk [vmem:[%s3 + $0x28] sm:$0xff] %vm419, %v286
  %426 = vst.msk [vmem:[%s3 + $0x30] sm:$0xff] %vm419, %v291
  %427 = vst.msk [vmem:[%s3 + $0x38] sm:$0xff] %vm419, %v296
  %428 = vst.msk [vmem:[%s3 + $0x40] sm:$0xff] %vm419, %v301
  %429 = vst.msk [vmem:[%s3 + $0x48] sm:$0xff] %vm419, %v306
  %430 = vst.msk [vmem:[%s3 + $0x50] sm:$0xff] %vm419, %v311
  %431 = vst.msk [vmem:[%s3 + $0x58] sm:$0xff] %vm419, %v316
  %432 = vst.msk [vmem:[%s3 + $0x60] sm:$0xff] %vm419, %v321
  %433 = vst.msk [vmem:[%s3 + $0x68] sm:$0xff] %vm419, %v326
  %434 = vst.msk [vmem:[%s3 + $0x70] sm:$0xff] %vm419, %v331
  %435 = vst.msk [vmem:[%s3 + $0x78] sm:$0xff] %vm419, %v336
  %436 = vst.msk [vmem:[%s3 + $0x80] sm:$0xff] %vm419, %v341
  %437 = vst.msk [vmem:[%s3 + $0x88] sm:$0xff] %vm419, %v346
  %438 = vst.msk [vmem:[%s3 + $0x90] sm:$0xff] %vm419, %v351
  %439 = vst.msk [vmem:[%s3 + $0x98] sm:$0xff] %vm419, %v356
  %440 = vst.msk [vmem:[%s3 + $0xa0] sm:$0xff] %vm419, %v361
  %441 = vst.msk [vmem:[%s3 + $0xa8] sm:$0xff] %vm419, %v366
  %442 = vst.msk [vmem:[%s3 + $0xb0] sm:$0xff] %vm419, %v371
  %443 = vst.msk [vmem:[%s3 + $0xb8] sm:$0xff] %vm419, %v376
  %444 = vst.msk [vmem:[%s3 + $0xc0] sm:$0xff] %vm419, %v381
  %445 = vst.msk [vmem:[%s3 + $0xc8] sm:$0xff] %vm419, %v386
  %446 = vst.msk [vmem:[%s3 + $0xd0] sm:$0xff] %vm419, %v391
  %447 = vst.msk [vmem:[%s3 + $0xd8] sm:$0xff] %vm419, %v396
  %448 = vst.msk [vmem:[%s3 + $0xe0] sm:$0xff] %vm419, %v401
  %449 = vst.msk [vmem:[%s3 + $0xe8] sm:$0xff] %vm419, %v406
  %450 = vst.msk [vmem:[%s3 + $0xf0] sm:$0xff] %vm419, %v411
  %451 = vst.msk [vmem:[%s3 + $0xf8] sm:$0xff] %vm419, %v416
  %s452 = scalar_lea.vmem %s0, 64
  %v453 = vld [vmem:[%s452] sm:$0xff]
  %v454 = vld [vmem:[%s452 + $0x8] sm:$0xff]
  %v455 = vld [vmem:[%s452 + $0x10] sm:$0xff]
  %v456 = vld [vmem:[%s452 + $0x18] sm:$0xff]
  %v457 = vld [vmem:[%s452 + $0x20] sm:$0xff]
  %v458 = vld [vmem:[%s452 + $0x28] sm:$0xff]
  %v459 = vld [vmem:[%s452 + $0x30] sm:$0xff]
  %v460 = vld [vmem:[%s452 + $0x38] sm:$0xff]
  %461 = vxpose.xlu0.b32.start [1/16] %v453, 128
  %462 = vxpose.xlu0.b32.cont [2/16] %v455, 128
  %463 = vxpose.xlu0.b32.cont [3/16] %v457, 128
  %464 = vxpose.xlu0.b32.cont [4/16] %v459, 128
  %465 = vxpose.xlu0.b32.cont [5/16] 0.0, 128
  %466 = vxpose.xlu0.b32.cont [6/16] 0.0, 128
  %467 = vxpose.xlu0.b32.cont [7/16] 0.0, 128
  %468 = vxpose.xlu0.b32.cont [8/16] 0.0, 128
  %469 = vxpose.xlu0.b32.cont [9/16] 0.0, 128
  %470 = vxpose.xlu0.b32.cont [10/16] 0.0, 128
  %471 = vxpose.xlu0.b32.cont [11/16] 0.0, 128
  %472 = vxpose.xlu0.b32.cont [12/16] 0.0, 128
  %473 = vxpose.xlu0.b32.cont [13/16] 0.0, 128
  %474 = vxpose.xlu0.b32.cont [14/16] 0.0, 128
  %475 = vxpose.xlu0.b32.cont [15/16] 0.0, 128
  %476 = vxpose.xlu0.b32.end [16/16] 0.0, 128
  %v477 = vpop.trf.xlu0
  %v478 = vpop.trf.xlu0
  %v479 = vpop.trf.xlu0
  %v480 = vpop.trf.xlu0
  %v481 = vpop.trf.xlu0
  %v482 = vpop.trf.xlu0
  %v483 = vpop.trf.xlu0
  %v484 = vpop.trf.xlu0
  %v485 = vpop.trf.xlu0
  %v486 = vpop.trf.xlu0
  %v487 = vpop.trf.xlu0
  %v488 = vpop.trf.xlu0
  %v489 = vpop.trf.xlu0
  %v490 = vpop.trf.xlu0
  %v491 = vpop.trf.xlu0
  %v492 = vpop.trf.xlu0
  %493 = vxpose.xlu0.b32.start [1/16] %v454, 128
  %494 = vxpose.xlu0.b32.cont [2/16] %v456, 128
  %495 = vxpose.xlu0.b32.cont [3/16] %v458, 128
  %496 = vxpose.xlu0.b32.cont [4/16] %v460, 128
  %497 = vxpose.xlu0.b32.cont [5/16] 0.0, 128
  %498 = vxpose.xlu0.b32.cont [6/16] 0.0, 128
  %499 = vxpose.xlu0.b32.cont [7/16] 0.0, 128
  %500 = vxpose.xlu0.b32.cont [8/16] 0.0, 128
  %501 = vxpose.xlu0.b32.cont [9/16] 0.0, 128
  %502 = vxpose.xlu0.b32.cont [10/16] 0.0, 128
  %503 = vxpose.xlu0.b32.cont [11/16] 0.0, 128
  %504 = vxpose.xlu0.b32.cont [12/16] 0.0, 128
  %505 = vxpose.xlu0.b32.cont [13/16] 0.0, 128
  %506 = vxpose.xlu0.b32.cont [14/16] 0.0, 128
  %507 = vxpose.xlu0.b32.cont [15/16] 0.0, 128
  %508 = vxpose.xlu0.b32.end [16/16] 0.0, 128
  %v509 = vpop.trf.xlu0
  %v510 = vpop.trf.xlu0
  %v511 = vpop.trf.xlu0
  %v512 = vpop.trf.xlu0
  %v513 = vpop.trf.xlu0
  %v514 = vpop.trf.xlu0
  %v515 = vpop.trf.xlu0
  %v516 = vpop.trf.xlu0
  %v517 = vpop.trf.xlu0
  %v518 = vpop.trf.xlu0
  %v519 = vpop.trf.xlu0
  %v520 = vpop.trf.xlu0
  %v521 = vpop.trf.xlu0
  %v522 = vpop.trf.xlu0
  %v523 = vpop.trf.xlu0
  %v524 = vpop.trf.xlu0
  %v526 = vsel %vm97, %v477, 0
  %v529 = vsel %vm97, %v478, 0
  %v532 = vsel %vm97, %v479, 0
  %v535 = vsel %vm97, %v480, 0
  %v538 = vsel %vm97, %v481, 0
  %v541 = vsel %vm97, %v482, 0
  %v544 = vsel %vm97, %v483, 0
  %v547 = vsel %vm97, %v484, 0
  %v550 = vsel %vm97, %v485, 0
  %v553 = vsel %vm97, %v486, 0
  %v556 = vsel %vm97, %v487, 0
  %v559 = vsel %vm97, %v488, 0
  %v562 = vsel %vm97, %v489, 0
  %v565 = vsel %vm97, %v490, 0
  %v568 = vsel %vm97, %v491, 0
  %v571 = vsel %vm97, %v492, 0
  %v574 = vsel %vm97, %v509, 0
  %v577 = vsel %vm97, %v510, 0
  %v580 = vsel %vm97, %v511, 0
  %v583 = vsel %vm97, %v512, 0
  %v586 = vsel %vm97, %v513, 0
  %v589 = vsel %vm97, %v514, 0
  %v592 = vsel %vm97, %v515, 0
  %v595 = vsel %vm97, %v516, 0
  %v598 = vsel %vm97, %v517, 0
  %v601 = vsel %vm97, %v518, 0
  %v604 = vsel %vm97, %v519, 0
  %v607 = vsel %vm97, %v520, 0
  %v610 = vsel %vm97, %v521, 0
  %v613 = vsel %vm97, %v522, 0
  %v616 = vsel %vm97, %v523, 0
  %v619 = vsel %vm97, %v524, 0
  %621 = vmatprep.subr.mxu0 0.0
  %622 = vmatpush1.msra.mxu0 %v14
  %623 = vmatprep.subr.mxu0 0.0
  %624 = vmatpush1.msra.mxu0 %v15
  %625 = vmatprep.subr.mxu0 0.0
  %626 = vmatpush1.msra.mxu0 %v16
  %627 = vmatprep.subr.mxu0 0.0
  %628 = vmatpush1.msra.mxu0 %v17
  %629 = vmatprep.subr.mxu0 0.0
  %630 = vmatpush1.msra.mxu0 0.0
  %631 = vmatprep.subr.mxu0 0.0
  %632 = vmatpush1.msra.mxu0 0.0
  %633 = vmatprep.subr.mxu0 0.0
  %634 = vmatpush1.msra.mxu0 0.0
  %635 = vmatprep.subr.mxu0 0.0
  %636 = vmatpush1.msra.mxu0 0.0
  %637 = vmatprep.subr.mxu0 0.0
  %638 = vmatpush1.msra.mxu0 0.0
  %639 = vmatprep.subr.mxu0 0.0
  %640 = vmatpush1.msra.mxu0 0.0
  %641 = vmatprep.subr.mxu0 0.0
  %642 = vmatpush1.msra.mxu0 0.0
  %643 = vmatprep.subr.mxu0 0.0
  %644 = vmatpush1.msra.mxu0 0.0
  %645 = vmatprep.subr.mxu0 0.0
  %646 = vmatpush1.msra.mxu0 0.0
  %647 = vmatprep.subr.mxu0 0.0
  %648 = vmatpush1.msra.mxu0 0.0
  %649 = vmatprep.subr.mxu0 0.0
  %650 = vmatpush1.msra.mxu0 0.0
  %651 = vmatprep.subr.mxu0 0.0
  %652 = vmatpush1.msra.mxu0 0.0
  %653 = vmatprep.subr.mxu0 0.0
  %654 = vmatpush1.msra.mxu0 0.0
  %655 = vmatprep.subr.mxu0 0.0
  %656 = vmatpush1.msra.mxu0 0.0
  %657 = vmatprep.subr.mxu0 0.0
  %658 = vmatpush1.msra.mxu0 0.0
  %659 = vmatprep.subr.mxu0 0.0
  %660 = vmatpush1.msra.mxu0 0.0
  %661 = vmatprep.subr.mxu0 0.0
  %662 = vmatpush1.msra.mxu0 0.0
  %663 = vmatprep.subr.mxu0 0.0
  %664 = vmatpush1.msra.mxu0 0.0
  %665 = vmatprep.subr.mxu0 0.0
  %666 = vmatpush1.msra.mxu0 0.0
  %667 = vmatprep.subr.mxu0 0.0
  %668 = vmatpush1.msra.mxu0 0.0
  %669 = vmatprep.subr.mxu0 0.0
  %670 = vmatpush1.msra.mxu0 0.0
  %671 = vmatprep.subr.mxu0 0.0
  %672 = vmatpush1.msra.mxu0 0.0
  %673 = vmatprep.subr.mxu0 0.0
  %674 = vmatpush1.msra.mxu0 0.0
  %675 = vmatprep.subr.mxu0 0.0
  %676 = vmatpush1.msra.mxu0 0.0
  %677 = vmatprep.subr.mxu0 0.0
  %678 = vmatpush1.msra.mxu0 0.0
  %679 = vmatprep.subr.mxu0 0.0
  %680 = vmatpush1.msra.mxu0 0.0
  %681 = vmatprep.subr.mxu0 0.0
  %682 = vmatpush1.msra.mxu0 0.0
  %683 = vmatprep.subr.mxu0 0.0
  %684 = vmatpush1.msra.mxu0 0.0
  %685 = vmatprep.mubr.f32.mxu0 0.0
  %686 = vmatmul.mubr.f32.gmra.mrb[0].mxu0 %v526
  %v687 = vpop.f32.mrb[0].mxu0
  %v688 = vadd.f32 %v31, %v687
  %v689 = vpop.f32.mrb[0].mxu0
  %690 = vmatprep.mubr.f32.mxu0 0.0
  %691 = vmatmul.mubr.f32.gmra.mrb[0].mxu0 %v529
  %v692 = vpop.f32.mrb[0].mxu0
  %v693 = vadd.f32 %v31, %v692
  %v694 = vpop.f32.mrb[0].mxu0
  %695 = vmatprep.mubr.f32.mxu0 0.0
  %696 = vmatmul.mubr.f32.gmra.mrb[0].mxu0 %v532
  %v697 = vpop.f32.mrb[0].mxu0
  %v698 = vadd.f32 %v31, %v697
  %v699 = vpop.f32.mrb[0].mxu0
  %700 = vmatprep.mubr.f32.mxu0 0.0
  %701 = vmatmul.mubr.f32.gmra.mrb[0].mxu0 %v535
  %v702 = vpop.f32.mrb[0].mxu0
  %v703 = vadd.f32 %v31, %v702
  %v704 = vpop.f32.mrb[0].mxu0
  %705 = vmatprep.mubr.f32.mxu0 0.0
  %706 = vmatmul.mubr.f32.gmra.mrb[0].mxu0 %v538
  %v707 = vpop.f32.mrb[0].mxu0
  %v708 = vadd.f32 %v31, %v707
  %v709 = vpop.f32.mrb[0].mxu0
  %710 = vmatprep.mubr.f32.mxu0 0.0
  %711 = vmatmul.mubr.f32.gmra.mrb[0].mxu0 %v541
  %v712 = vpop.f32.mrb[0].mxu0
  %v713 = vadd.f32 %v31, %v712
  %v714 = vpop.f32.mrb[0].mxu0
  %715 = vmatprep.mubr.f32.mxu0 0.0
  %716 = vmatmul.mubr.f32.gmra.mrb[0].mxu0 %v544
  %v717 = vpop.f32.mrb[0].mxu0
  %v718 = vadd.f32 %v31, %v717
  %v719 = vpop.f32.mrb[0].mxu0
  %720 = vmatprep.mubr.f32.mxu0 0.0
  %721 = vmatmul.mubr.f32.gmra.mrb[0].mxu0 %v547
  %v722 = vpop.f32.mrb[0].mxu0
  %v723 = vadd.f32 %v31, %v722
  %v724 = vpop.f32.mrb[0].mxu0
  %725 = vmatprep.mubr.f32.mxu0 0.0
  %726 = vmatmul.mubr.f32.gmra.mrb[0].mxu0 %v550
  %v727 = vpop.f32.mrb[0].mxu0
  %v728 = vadd.f32 %v31, %v727
  %v729 = vpop.f32.mrb[0].mxu0
  %730 = vmatprep.mubr.f32.mxu0 0.0
  %731 = vmatmul.mubr.f32.gmra.mrb[0].mxu0 %v553
  %v732 = vpop.f32.mrb[0].mxu0
  %v733 = vadd.f32 %v31, %v732
  %v734 = vpop.f32.mrb[0].mxu0
  %735 = vmatprep.mubr.f32.mxu0 0.0
  %736 = vmatmul.mubr.f32.gmra.mrb[0].mxu0 %v556
  %v737 = vpop.f32.mrb[0].mxu0
  %v738 = vadd.f32 %v31, %v737
  %v739 = vpop.f32.mrb[0].mxu0
  %740 = vmatprep.mubr.f32.mxu0 0.0
  %741 = vmatmul.mubr.f32.gmra.mrb[0].mxu0 %v559
  %v742 = vpop.f32.mrb[0].mxu0
  %v743 = vadd.f32 %v31, %v742
  %v744 = vpop.f32.mrb[0].mxu0
  %745 = vmatprep.mubr.f32.mxu0 0.0
  %746 = vmatmul.mubr.f32.gmra.mrb[0].mxu0 %v562
  %v747 = vpop.f32.mrb[0].mxu0
  %v748 = vadd.f32 %v31, %v747
  %v749 = vpop.f32.mrb[0].mxu0
  %750 = vmatprep.mubr.f32.mxu0 0.0
  %751 = vmatmul.mubr.f32.gmra.mrb[0].mxu0 %v565
  %v752 = vpop.f32.mrb[0].mxu0
  %v753 = vadd.f32 %v31, %v752
  %v754 = vpop.f32.mrb[0].mxu0
  %755 = vmatprep.mubr.f32.mxu0 0.0
  %756 = vmatmul.mubr.f32.gmra.mrb[0].mxu0 %v568
  %v757 = vpop.f32.mrb[0].mxu0
  %v758 = vadd.f32 %v31, %v757
  %v759 = vpop.f32.mrb[0].mxu0
  %760 = vmatprep.mubr.f32.mxu0 0.0
  %761 = vmatmul.mubr.f32.gmra.mrb[0].mxu0 %v571
  %v762 = vpop.f32.mrb[0].mxu0
  %v763 = vadd.f32 %v31, %v762
  %v764 = vpop.f32.mrb[0].mxu0
  %765 = vmatprep.mubr.f32.mxu0 0.0
  %766 = vmatmul.mubr.f32.gmra.mrb[0].mxu0 %v574
  %v767 = vpop.f32.mrb[0].mxu0
  %v768 = vadd.f32 %v31, %v767
  %v769 = vpop.f32.mrb[0].mxu0
  %770 = vmatprep.mubr.f32.mxu0 0.0
  %771 = vmatmul.mubr.f32.gmra.mrb[0].mxu0 %v577
  %v772 = vpop.f32.mrb[0].mxu0
  %v773 = vadd.f32 %v31, %v772
  %v774 = vpop.f32.mrb[0].mxu0
  %775 = vmatprep.mubr.f32.mxu0 0.0
  %776 = vmatmul.mubr.f32.gmra.mrb[0].mxu0 %v580
  %v777 = vpop.f32.mrb[0].mxu0
  %v778 = vadd.f32 %v31, %v777
  %v779 = vpop.f32.mrb[0].mxu0
  %780 = vmatprep.mubr.f32.mxu0 0.0
  %781 = vmatmul.mubr.f32.gmra.mrb[0].mxu0 %v583
  %v782 = vpop.f32.mrb[0].mxu0
  %v783 = vadd.f32 %v31, %v782
  %v784 = vpop.f32.mrb[0].mxu0
  %785 = vmatprep.mubr.f32.mxu0 0.0
  %786 = vmatmul.mubr.f32.gmra.mrb[0].mxu0 %v586
  %v787 = vpop.f32.mrb[0].mxu0
  %v788 = vadd.f32 %v31, %v787
  %v789 = vpop.f32.mrb[0].mxu0
  %790 = vmatprep.mubr.f32.mxu0 0.0
  %791 = vmatmul.mubr.f32.gmra.mrb[0].mxu0 %v589
  %v792 = vpop.f32.mrb[0].mxu0
  %v793 = vadd.f32 %v31, %v792
  %v794 = vpop.f32.mrb[0].mxu0
  %795 = vmatprep.mubr.f32.mxu0 0.0
  %796 = vmatmul.mubr.f32.gmra.mrb[0].mxu0 %v592
  %v797 = vpop.f32.mrb[0].mxu0
  %v798 = vadd.f32 %v31, %v797
  %v799 = vpop.f32.mrb[0].mxu0
  %800 = vmatprep.mubr.f32.mxu0 0.0
  %801 = vmatmul.mubr.f32.gmra.mrb[0].mxu0 %v595
  %v802 = vpop.f32.mrb[0].mxu0
  %v803 = vadd.f32 %v31, %v802
  %v804 = vpop.f32.mrb[0].mxu0
  %805 = vmatprep.mubr.f32.mxu0 0.0
  %806 = vmatmul.mubr.f32.gmra.mrb[0].mxu0 %v598
  %v807 = vpop.f32.mrb[0].mxu0
  %v808 = vadd.f32 %v31, %v807
  %v809 = vpop.f32.mrb[0].mxu0
  %810 = vmatprep.mubr.f32.mxu0 0.0
  %811 = vmatmul.mubr.f32.gmra.mrb[0].mxu0 %v601
  %v812 = vpop.f32.mrb[0].mxu0
  %v813 = vadd.f32 %v31, %v812
  %v814 = vpop.f32.mrb[0].mxu0
  %815 = vmatprep.mubr.f32.mxu0 0.0
  %816 = vmatmul.mubr.f32.gmra.mrb[0].mxu0 %v604
  %v817 = vpop.f32.mrb[0].mxu0
  %v818 = vadd.f32 %v31, %v817
  %v819 = vpop.f32.mrb[0].mxu0
  %820 = vmatprep.mubr.f32.mxu0 0.0
  %821 = vmatmul.mubr.f32.gmra.mrb[0].mxu0 %v607
  %v822 = vpop.f32.mrb[0].mxu0
  %v823 = vadd.f32 %v31, %v822
  %v824 = vpop.f32.mrb[0].mxu0
  %825 = vmatprep.mubr.f32.mxu0 0.0
  %826 = vmatmul.mubr.f32.gmra.mrb[0].mxu0 %v610
  %v827 = vpop.f32.mrb[0].mxu0
  %v828 = vadd.f32 %v31, %v827
  %v829 = vpop.f32.mrb[0].mxu0
  %830 = vmatprep.mubr.f32.mxu0 0.0
  %831 = vmatmul.mubr.f32.gmra.mrb[0].mxu0 %v613
  %v832 = vpop.f32.mrb[0].mxu0
  %v833 = vadd.f32 %v31, %v832
  %v834 = vpop.f32.mrb[0].mxu0
  %835 = vmatprep.mubr.f32.mxu0 0.0
  %836 = vmatmul.mubr.f32.gmra.mrb[0].mxu0 %v616
  %v837 = vpop.f32.mrb[0].mxu0
  %v838 = vadd.f32 %v31, %v837
  %v839 = vpop.f32.mrb[0].mxu0
  %840 = vmatprep.mubr.f32.mxu0 0.0
  %841 = vmatmul.mubr.f32.gmra.mrb[0].mxu0 %v619
  %v842 = vpop.f32.mrb[0].mxu0
  %v843 = vadd.f32 %v31, %v842
  %v844 = vpop.f32.mrb[0].mxu0
  %845 = vdwg.mxu0
  %s846 = scalar_lea.vmem %s3, 256
  %847 = vst.msk [vmem:[%s846] sm:$0xff] %vm419, %v688
  %848 = vst.msk [vmem:[%s846 + $0x8] sm:$0xff] %vm419, %v693
  %849 = vst.msk [vmem:[%s846 + $0x10] sm:$0xff] %vm419, %v698
  %850 = vst.msk [vmem:[%s846 + $0x18] sm:$0xff] %vm419, %v703
  %851 = vst.msk [vmem:[%s846 + $0x20] sm:$0xff] %vm419, %v708
  %852 = vst.msk [vmem:[%s846 + $0x28] sm:$0xff] %vm419, %v713
  %853 = vst.msk [vmem:[%s846 + $0x30] sm:$0xff] %vm419, %v718
  %854 = vst.msk [vmem:[%s846 + $0x38] sm:$0xff] %vm419, %v723
  %855 = vst.msk [vmem:[%s846 + $0x40] sm:$0xff] %vm419, %v728
  %856 = vst.msk [vmem:[%s846 + $0x48] sm:$0xff] %vm419, %v733
  %857 = vst.msk [vmem:[%s846 + $0x50] sm:$0xff] %vm419, %v738
  %858 = vst.msk [vmem:[%s846 + $0x58] sm:$0xff] %vm419, %v743
  %859 = vst.msk [vmem:[%s846 + $0x60] sm:$0xff] %vm419, %v748
  %860 = vst.msk [vmem:[%s846 + $0x68] sm:$0xff] %vm419, %v753
  %861 = vst.msk [vmem:[%s846 + $0x70] sm:$0xff] %vm419, %v758
  %862 = vst.msk [vmem:[%s846 + $0x78] sm:$0xff] %vm419, %v763
  %863 = vst.msk [vmem:[%s846 + $0x80] sm:$0xff] %vm419, %v768
  %864 = vst.msk [vmem:[%s846 + $0x88] sm:$0xff] %vm419, %v773
  %865 = vst.msk [vmem:[%s846 + $0x90] sm:$0xff] %vm419, %v778
  %866 = vst.msk [vmem:[%s846 + $0x98] sm:$0xff] %vm419, %v783
  %867 = vst.msk [vmem:[%s846 + $0xa0] sm:$0xff] %vm419, %v788
  %868 = vst.msk [vmem:[%s846 + $0xa8] sm:$0xff] %vm419, %v793
  %869 = vst.msk [vmem:[%s846 + $0xb0] sm:$0xff] %vm419, %v798
  %870 = vst.msk [vmem:[%s846 + $0xb8] sm:$0xff] %vm419, %v803
  %871 = vst.msk [vmem:[%s846 + $0xc0] sm:$0xff] %vm419, %v808
  %872 = vst.msk [vmem:[%s846 + $0xc8] sm:$0xff] %vm419, %v813
  %873 = vst.msk [vmem:[%s846 + $0xd0] sm:$0xff] %vm419, %v818
  %874 = vst.msk [vmem:[%s846 + $0xd8] sm:$0xff] %vm419, %v823
  %875 = vst.msk [vmem:[%s846 + $0xe0] sm:$0xff] %vm419, %v828
  %876 = vst.msk [vmem:[%s846 + $0xe8] sm:$0xff] %vm419, %v833
  %877 = vst.msk [vmem:[%s846 + $0xf0] sm:$0xff] %vm419, %v838
  %878 = vst.msk [vmem:[%s846 + $0xf8] sm:$0xff] %vm419, %v843
  // Predicated region
  $region14: #{_regression_head_impl.1} parent=0 // pred_check
    _
  $region15: #{_regression_head_impl.1} parent=0 // pred_check_branch
    %880 = sbr.rel (0) target = $region17
  $region16: #{_regression_head_impl.1} parent=0 // pred_region
    _
  $region17: #{_regression_head_impl.1} parent=0 // pred_fallthru
    _
  // Predicated region
  $region18: #{_regression_head_impl.1} parent=0 // pred_check
    _
  $region19: #{_regression_head_impl.1} parent=0 // pred_check_branch
    %882 = sbr.rel (0) target = $region21
  $region20: #{_regression_head_impl.1} parent=0 // pred_region
    _
  $region21: #{_regression_head_impl.1} parent=0 // pred_fallthru
    _

</llo_original>
